<compile_context>
chip_gen: v6e
topology: v6e:2x2x1
jax: 0.10.0
libtpu: 0.0.40
codegen_flags: <defaults>
</compile_context>

<pallas_src>
import functools

import jax
import jax.numpy as jnp
from jax import lax
from jax.experimental import pallas as pl
from jax.experimental.pallas import tpu as pltpu


# ------------------------------- kernel ------------------------------------

def _conv_bn_kernel(*refs, tap_specs, halo):
    """One (batch, C_out-tile, L-tile) grid step of the fused conv + BN.

    refs (halo=True ): x0_ref, x1_ref, w_ref, bn_ref, o_ref
    refs (halo=False): x0_ref,        w_ref, bn_ref, o_ref

    x0_ref : (1, n_phase, C_in, Lt)   flat phased input, block l      (bf16)
    x1_ref : (1, n_phase, C_in, Lt)   flat phased input, block l+1    (bf16)
    w_ref  : (tn, K*K*C_in)           tap-major / C_in-minor weights  (bf16)
    bn_ref : (tn, 2)                  [:,0]=scale  [:,1]=shift        (f32)
    o_ref  : (1, tn, Lt)              flat conv+BN output tile        (f32)
    """
    if halo:
        x0_ref, x1_ref, w_ref, bn_ref, o_ref = refs
    else:
        x0_ref, w_ref, bn_ref, o_ref = refs
        x1_ref = None
    lt = o_ref.shape[-1]

    # Build the (K*K*C_in, Lt) stacked-tap operand with STATIC slices only:
    # per used phase, concatenate blocks l and l+1 once (halo window), then
    # take one static shifted slice per tap.
    windows = {}
    taps = []
    for phase, off in tap_specs:
        if phase not in windows:
            if halo:
                windows[phase] = jnp.concatenate(
                    [x0_ref[0, phase], x1_ref[0, phase]], axis=-1)  # (C_in, 2*Lt)
            else:
                windows[phase] = x0_ref[0, phase]                   # (C_in, Lt)
        taps.append(lax.slice_in_dim(windows[phase], off, off + lt, axis=-1))
    xs = taps[0] if len(taps) == 1 else jnp.concatenate(taps, axis=0)

    # One MXU matmul: (tn, K*K*C_in) @ (K*K*C_in, Lt), bf16 in / f32 accumulate.
    acc = jnp.dot(w_ref[...], xs, preferred_element_type=jnp.float32)

    # Fused eval-mode BatchNorm epilogue in f32 (BasicConv2d has no activation).
    y = acc * bn_ref[:, 0:1] + bn_ref[:, 1:2]
    o_ref[0] = y.astype(o_ref.dtype)


# ------------------------------- wrapper ------------------------------------

def _round_up(a, m):
    return (a + m - 1) // m * m


def basic_conv2d(x, weight, bn_gamma, bn_beta, bn_mean, bn_var,
                 *, stride=1, padding=0, dilation=1, eps=1e-5, lane_tile=512):
    """BasicConv2d forward: y = BatchNorm2d(Conv2d(x, weight, bias=False))."""
    B, C_in, H, W = x.shape
    C_out, C_in_w, K_h, K_w = weight.shape
    assert C_in_w == C_in, "C_in mismatch"
    s, p, d = stride, padding, dilation

    Hp, Wp = H + 2 * p, W + 2 * p
    H_out = (Hp - d * (K_h - 1) - 1) // s + 1
    W_out = (Wp - d * (K_w - 1) - 1) // s + 1
    assert H_out > 0 and W_out > 0, "kernel larger than padded input"

    # ---- phase decomposition of the zero-padded input (handles stride) ------
    Hq, Wq = -(-Hp // s), -(-Wp // s)                 # per-phase spatial extent
    pad_h, pad_w = Hq * s - Hp, Wq * s - Wp
    xp = jnp.pad(x, ((0, 0), (0, 0), (p, p + pad_h), (p, p + pad_w)))

    # Tap (ky,kx) reads phase (ky*d % s, kx*d % s) at flat offset
    # (ky*d // s) * Wq + (kx*d // s) relative to the output's flat position.
    raw = []
    for ky in range(K_h):
        for kx in range(K_w):
            ay, ax = ky * d, kx * d
            raw.append(((ay % s, ax % s), (ay // s) * Wq + (ax // s)))
    phases = sorted(set(ph for ph, _ in raw))
    phase_idx = {ph: i for i, ph in enumerate(phases)}
    tap_specs = tuple((phase_idx[ph], off) for ph, off in raw)
    n_phase = len(phases)
    max_off = max(off for _, off in tap_specs)

    # ---- flat / lane-aligned tiling geometry ---------------------------------
    LANE = 128
    L = H_out * Wq                        # flat output length (incl. wrap cols)
    Lt = max(min(lane_tile, _round_up(L, LANE)),
             _round_up(max(max_off, 1), LANE))        # Lt >= max_off, 128-aligned
    L_pad = _round_up(L, Lt)
    n_l = L_pad // Lt
    halo = max_off > 0
    n_xblk = max(n_l + (1 if halo else 0), -(-(Hq * Wq) // Lt))
    Lq_pad = n_xblk * Lt

    # Phased, flattened, bf16 input: (B, n_phase, C_in, Lq_pad).
    xph = jnp.stack([xp[:, :, ry::s, rx::s] for (ry, rx) in phases], axis=1)
    xflat = xph.reshape(B, n_phase, C_in, Hq * Wq).astype(jnp.bfloat16)
    xflat = jnp.pad(xflat, ((0, 0), (0, 0), (0, 0), (0, Lq_pad - Hq * Wq)))

    # Weights as (C_out, K*K*C_in), tap-major / C_in-minor (matches in-kernel
    # stacking order), bf16 for the MXU.
    kkc = K_h * K_w * C_in
    wk = jnp.transpose(weight, (0, 2, 3, 1)).reshape(C_out, kkc)
    wk = wk.astype(jnp.bfloat16)

    # Eval-mode BatchNorm folded into per-channel scale/shift, packed (C_out,2).
    scale = bn_gamma / jnp.sqrt(bn_var + eps)
    shift = bn_beta - bn_mean * scale
    bn = jnp.stack([scale, shift], axis=1).astype(jnp.float32)

    # C_out tile: 256 fills the v6e/v7x MXU; 128 is already ideal for v5e.
    if C_out % 256 == 0:
        tn = 256
    elif C_out % 128 == 0:
        tn = 128
    else:
        tn = C_out

    grid = (B, C_out // tn, n_l)

    x_specs = [pl.BlockSpec((1, n_phase, C_in, Lt), lambda b, j, l: (b, 0, 0, l))]
    if halo:   # same array again, one block ahead -> static in-kernel halo
        x_specs.append(
            pl.BlockSpec((1, n_phase, C_in, Lt), lambda b, j, l: (b, 0, 0, l + 1)))

    out_flat = pl.pallas_call(
        functools.partial(_conv_bn_kernel, tap_specs=tap_specs, halo=halo),
        out_shape=jax.ShapeDtypeStruct((B, C_out, L_pad), jnp.float32),
        grid=grid,
        in_specs=x_specs + [
            pl.BlockSpec((tn, kkc), lambda b, j, l: (j, 0)),
            pl.BlockSpec((tn, 2), lambda b, j, l: (j, 0)),
        ],
        out_specs=pl.BlockSpec((1, tn, Lt), lambda b, j, l: (b, j, l)),
        compiler_params=pltpu.CompilerParams(
            dimension_semantics=("parallel", "parallel", "parallel"),
            vmem_limit_bytes=48 * 1024 * 1024),
    )(*([xflat, xflat] if halo else [xflat]), wk, bn)

    # Drop the flat padding / row-wrap columns (free when there are none).
    if L_pad == L and Wq == W_out:
        return out_flat.reshape(B, C_out, H_out, W_out)
    # TODO(synk): this wrap-column drop is one extra XLA pass over the output;
    # folding it into the kernel store would require masked (non lane-dense)
    # stores, so it is kept in the wrapper.
    out = out_flat[:, :, :L].reshape(B, C_out, H_out, Wq)
    return out[:, :, :, :W_out]


# ----------------------------- pure-JAX reference ---------------------------

def _reference(x, weight, gamma, beta, mean, var, *, stride, padding, dilation,
               eps=1e-5):
    y = lax.conv_general_dilated(
        x, weight,
        window_strides=(stride, stride),
        padding=[(padding, padding), (padding, padding)],
        rhs_dilation=(dilation, dilation),
        dimension_numbers=("NCHW", "OIHW", "NCHW"),
        precision=lax.Precision.HIGHEST)
    scale = gamma / jnp.sqrt(var + eps)
    shift = beta - mean * scale
    return y * scale[None, :, None, None] + shift[None, :, None, None]


# --------------------------------- main --------------------------------------

if __name__ == "__main__":
    key = jax.random.PRNGKey(0)

    def make_case(k, B, C_in, C_out, H, W, K):
        ks = jax.random.split(k, 6)
        x = jax.random.normal(ks[0], (B, C_in, H, W), jnp.float32)
        w = 0.1 * jax.random.normal(ks[1], (C_out, C_in, K, K), jnp.float32)
        gamma = 1.0 + 0.1 * jax.random.normal(ks[2], (C_out,), jnp.float32)
        beta = 0.1 * jax.random.normal(ks[3], (C_out,), jnp.float32)
        mean = 0.1 * jax.random.normal(ks[4], (C_out,), jnp.float32)
        var = jnp.abs(jax.random.normal(ks[5], (C_out,), jnp.float32)) + 0.5
        return x, w, gamma, beta, mean, var

    # (C_in, C_out, K, stride, padding, dilation)
    cases = [
        (16, 32, 3, 1, 1, 1),   # standard 3x3 "same" conv
        (32, 64, 1, 1, 0, 1),   # pointwise 1x1 conv
        (16, 32, 3, 2, 1, 1),   # strided 3x3 conv (phase-decomposed path)
        (16, 32, 3, 1, 2, 2),   # dilated 3x3 conv
    ]
    keys = jax.random.split(key, len(cases))

    for kk, (C_in, C_out, K, s, p, d) in zip(keys, cases):
        x, w, g, b, m, v = make_case(kk, 2, C_in, C_out, 16, 16, K)
        fwd = jax.jit(functools.partial(basic_conv2d,
                                        stride=s, padding=p, dilation=d))
        out = fwd(x, w, g, b, m, v)
        jax.block_until_ready(out)

        ref = _reference(x, w, g, b, m, v, stride=s, padding=p, dilation=d)
        assert out.shape == ref.shape, (out.shape, ref.shape)
        assert bool(jnp.all(jnp.isfinite(out)))

        # Tight correctness check: reference on the same bf16-quantized operands
        # the kernel feeds to the MXU (accumulation is f32 on both sides).
        x_q = x.astype(jnp.bfloat16).astype(jnp.float32)
        w_q = w.astype(jnp.bfloat16).astype(jnp.float32)
        ref_q = _reference(x_q, w_q, g, b, m, v, stride=s, padding=p, dilation=d)
        err_q = float(jnp.max(jnp.abs(out - ref_q)))
        assert err_q < 2e-3, ("bf16-consistent mismatch", err_q)

        # Loose check vs the full-f32 module semantics (bf16 MXU quantization).
        err_f = float(jnp.max(jnp.abs(out - ref)))
        assert err_f < 6e-2, ("f32 reference mismatch", err_f)

    print("KERNEL_OK")
</pallas_src>

<mosaic_0001>
module attributes {stable_mosaic.version = 11 : i64} {
  func.func @_conv_bn_kernel(%arg0: i32, %arg1: i32, %arg2: i32, %arg3: memref<1x1x16x384xbf16, #tpu.memory_space<vmem>>, %arg4: memref<1x1x16x384xbf16, #tpu.memory_space<vmem>>, %arg5: memref<32x144xbf16, #tpu.memory_space<vmem>>, %arg6: memref<32x2xf32, #tpu.memory_space<vmem>>, %arg7: memref<1x32x384xf32, #tpu.memory_space<vmem>>) attributes {dimension_semantics = [#tpu.dimension_semantics<parallel>, #tpu.dimension_semantics<parallel>, #tpu.dimension_semantics<parallel>], iteration_bounds = array<i64: 2, 1, 1>, scalar_prefetch = 0 : i64, scratch_operands = 0 : i64, tpu.core_type = #tpu.core_type<tc>, window_params = [{transform_indices = @transform_0, window_bounds = array<i64: 1, 1, 16, 384>}, {transform_indices = @transform_1, window_bounds = array<i64: 1, 1, 16, 384>}, {transform_indices = @transform_2, window_bounds = array<i64: 32, 144>}, {transform_indices = @transform_3, window_bounds = array<i64: 32, 2>}, {transform_indices = @transform_4, window_bounds = array<i64: 1, 32, 384>}]} {
    %c0 = arith.constant 0 : index
    %c0_0 = arith.constant 0 : index
    %c0_1 = arith.constant 0 : index
    %c0_2 = arith.constant 0 : index
    %0 = vector.load %arg3[%c0, %c0_0, %c0_1, %c0_2] : memref<1x1x16x384xbf16, #tpu.memory_space<vmem>>, vector<1x1x16x384xbf16>
    %1 = vector.shape_cast %0 : vector<1x1x16x384xbf16> to vector<16x384xbf16>
    %c0_3 = arith.constant 0 : index
    %c0_4 = arith.constant 0 : index
    %c0_5 = arith.constant 0 : index
    %c0_6 = arith.constant 0 : index
    %2 = vector.load %arg4[%c0_3, %c0_4, %c0_5, %c0_6] : memref<1x1x16x384xbf16, #tpu.memory_space<vmem>>, vector<1x1x16x384xbf16>
    %3 = vector.shape_cast %2 : vector<1x1x16x384xbf16> to vector<16x384xbf16>
    %4 = tpu.concatenate %1, %3 in 1 : vector<16x384xbf16>, vector<16x384xbf16> -> vector<16x768xbf16>
    %5 = vector.extract_strided_slice %4 {offsets = [0, 0], sizes = [16, 384], strides = [1, 1]} : vector<16x768xbf16> to vector<16x384xbf16>
    %6 = vector.extract_strided_slice %4 {offsets = [0, 1], sizes = [16, 384], strides = [1, 1]} : vector<16x768xbf16> to vector<16x384xbf16>
    %7 = vector.extract_strided_slice %4 {offsets = [0, 2], sizes = [16, 384], strides = [1, 1]} : vector<16x768xbf16> to vector<16x384xbf16>
    %8 = vector.extract_strided_slice %4 {offsets = [0, 18], sizes = [16, 384], strides = [1, 1]} : vector<16x768xbf16> to vector<16x384xbf16>
    %9 = vector.extract_strided_slice %4 {offsets = [0, 19], sizes = [16, 384], strides = [1, 1]} : vector<16x768xbf16> to vector<16x384xbf16>
    %10 = vector.extract_strided_slice %4 {offsets = [0, 20], sizes = [16, 384], strides = [1, 1]} : vector<16x768xbf16> to vector<16x384xbf16>
    %11 = vector.extract_strided_slice %4 {offsets = [0, 36], sizes = [16, 384], strides = [1, 1]} : vector<16x768xbf16> to vector<16x384xbf16>
    %12 = vector.extract_strided_slice %4 {offsets = [0, 37], sizes = [16, 384], strides = [1, 1]} : vector<16x768xbf16> to vector<16x384xbf16>
    %13 = vector.extract_strided_slice %4 {offsets = [0, 38], sizes = [16, 384], strides = [1, 1]} : vector<16x768xbf16> to vector<16x384xbf16>
    %14 = tpu.concatenate %5, %6, %7, %8, %9, %10, %11, %12, %13 in 0 : vector<16x384xbf16>, vector<16x384xbf16>, vector<16x384xbf16>, vector<16x384xbf16>, vector<16x384xbf16>, vector<16x384xbf16>, vector<16x384xbf16>, vector<16x384xbf16>, vector<16x384xbf16> -> vector<144x384xbf16>
    %c0_7 = arith.constant 0 : index
    %c0_8 = arith.constant 0 : index
    %15 = vector.load %arg5[%c0_7, %c0_8] : memref<32x144xbf16, #tpu.memory_space<vmem>>, vector<32x144xbf16>
    %cst = arith.constant dense<0.000000e+00> : vector<32x384xf32>
    %16 = tpu.matmul %15, %14, %cst {dimension_numbers = #tpu.dot_dimension_numbers<[1], [0], [0], [1], [0, 0, 1, 1], [], []>} : vector<32x144xbf16>, vector<144x384xbf16>, vector<32x384xf32> -> vector<32x384xf32>
    %c0_9 = arith.constant 0 : index
    %c0_10 = arith.constant 0 : index
    %17 = vector.load %arg6[%c0_9, %c0_10] : memref<32x2xf32, #tpu.memory_space<vmem>>, vector<32x1xf32>
    %18 = vector.broadcast %17 : vector<32x1xf32> to vector<32x384xf32>
    %19 = arith.mulf %16, %18 : vector<32x384xf32>
    %c0_11 = arith.constant 0 : index
    %c1 = arith.constant 1 : index
    %20 = vector.load %arg6[%c0_11, %c1] : memref<32x2xf32, #tpu.memory_space<vmem>>, vector<32x1xf32>
    %21 = vector.broadcast %20 : vector<32x1xf32> to vector<32x384xf32>
    %22 = arith.addf %19, %21 : vector<32x384xf32>
    %c0_12 = arith.constant 0 : index
    %c0_13 = arith.constant 0 : index
    %c0_14 = arith.constant 0 : index
    %23 = vector.load %arg7[%c0_12, %c0_13, %c0_14] : memref<1x32x384xf32, #tpu.memory_space<vmem>>, vector<1x32x384xf32>
    %24 = vector.shape_cast %23 : vector<1x32x384xf32> to vector<32x384xf32>
    %25 = vector.shape_cast %22 : vector<32x384xf32> to vector<1x32x384xf32>
    tpu.vector_store %arg7[%c0_12, %c0_13, %c0_14], %25 {strides = array<i32>} : memref<1x32x384xf32, #tpu.memory_space<vmem>>, vector<1x32x384xf32>,
    return
  }
  func.func @transform_0(%arg0: i32, %arg1: i32, %arg2: i32) -> (i32, i32, i32, i32) {
    %c0_i32 = arith.constant 0 : i32
    %c0_i32_0 = arith.constant 0 : i32
    %c0_i32_1 = arith.constant 0 : i32
    return %arg0, %c0_i32, %c0_i32_0, %arg2 : i32, i32, i32, i32
  }
  func.func @transform_1(%arg0: i32, %arg1: i32, %arg2: i32) -> (i32, i32, i32, i32) {
    %c1_i32 = arith.constant 1 : i32
    %0 = arith.addi %arg2, %c1_i32 : i32
    %c0_i32 = arith.constant 0 : i32
    %c0_i32_0 = arith.constant 0 : i32
    %c0_i32_1 = arith.constant 0 : i32
    return %arg0, %c0_i32, %c0_i32_0, %0 : i32, i32, i32, i32
  }
  func.func @transform_2(%arg0: i32, %arg1: i32, %arg2: i32) -> (i32, i32) {
    %c0_i32 = arith.constant 0 : i32
    %c0_i32_0 = arith.constant 0 : i32
    return %arg1, %c0_i32 : i32, i32
  }
  func.func @transform_3(%arg0: i32, %arg1: i32, %arg2: i32) -> (i32, i32) {
    %c0_i32 = arith.constant 0 : i32
    %c0_i32_0 = arith.constant 0 : i32
    return %arg1, %c0_i32 : i32, i32
  }
  func.func @transform_4(%arg0: i32, %arg1: i32, %arg2: i32) -> (i32, i32, i32) {
    %c0_i32 = arith.constant 0 : i32
    return %arg0, %arg1, %arg2 : i32, i32, i32
  }
}

</mosaic_0001>

<llo_original>
// kernel: basic_conv2d.1
$region0: #{basic_conv2d.1}
  #allocation0 [shape = 'u32[]', space=smem, size = 0x4, offset = 0x4, fixed_abs, tag = 'smem constant byte address 0x4 - core index']
  #allocation1 [shape = 'u32[144,128]{1,0:T(1,128)}', space=vmem, size = 0x12000, scoped, tag = 'internal scratch']
  %s0 = inlined_call_operand.vmem [shape: bf16[2,1,16,768], index: 0, kind: input, shape index: {}, may-alias: {0,1}]
  %s1 = inlined_call_operand.vmem [shape: bf16[2,1,16,768], index: 1, kind: input, shape index: {}, may-alias: {0,1}]
  %s2 = inlined_call_operand.vmem [shape: bf16[32,144], index: 2, kind: input, shape index: {}]
  %s3 = inlined_call_operand.vmem [shape: f32[32,2], index: 3, kind: input, shape index: {}]
  %s4 = inlined_call_operand.vmem [shape: f32[2,32,384], index: 4, kind: output, shape index: {}]
  %s5 = sld [smem:[#allocation0]]
  $region101: #{basic_conv2d.1} parent=0
    _
  %s7 = ssub.s32 1, %s5
  %s8 = scalar_select 0, %s7, %s5
  $region1: #{basic_conv2d.1} parent=0
    #allocation2 [shape = 'u8[24576]{0}', space=vmem, size = 0x6000, scoped, tag = 'input window, operand 0']
    #allocation3 [shape = 'u8[24576]{0}', space=vmem, size = 0x6000, scoped, tag = 'input window, operand 1']
    loop: start=0, step=1, limit=4
    $region2: #{basic_conv2d.1} parent=1 // loop_pre_header
      _
    $region3: #{basic_conv2d.1} parent=1 // loop_header
      %s10 = sphi 0, %s14
      %p11 = scmp.ge.s32.totalorder %s10, 4
      %s17 = sphi 0, %s36
      %s18 = sphi 0, %s32
      %s19 = sphi 0, %s28
      %s20 = sphi 0, %s17
      %s21 = sphi 0, %s18
      %s22 = sphi 0, %s19
      %s23 = sphi 0, %s20
      %s24 = sphi 0, %s21
      %s25 = sphi 0, %s22
      %s41 = sphi 0, %s43
      %s44 = sphi 0, %s41
      %s45 = sphi 0, %s44
      %s61 = sphi 0, %s45
      %s71 = sphi 0, %s73
      %s74 = sphi 0, %s71
      %s75 = sphi 0, %s74
      %s91 = sphi 0, %s75
      %s97 = sphi 0, %s99
      %s100 = sphi 0, %s97
      %s101 = sphi 0, %s100
      %s117 = sphi 0, %s101
      %s123 = sphi 0, %s125
      %s126 = sphi 0, %s123
      %s127 = sphi 0, %s126
      %s143 = sphi 0, %s127
      %s153 = sphi 0, %s155
      %s156 = sphi 0, %s153
      %s157 = sphi 0, %s156
      %s173 = sphi 0, %s157
    $region4: #{basic_conv2d.1} parent=1 // loop_header_branch
      %13 = sbr.rel (%p11) target = $region8
    $region5: #{basic_conv2d.1} parent=1 // loop_body
      %s15 = ssub.s32 %s10, 1
      %s16 = ssub.s32 %s10, 2
      %s26 = sadd.s32 1, %s19
      %p27 = scmp.ge.s32.totalorder %s26, 1
      %s28 = scalar_select %p27, 0, %s26
      %s29 = sadd.s32 1, %s18
      %s30 = scalar_select %p27, %s29, %s18
      %p31 = scmp.ge.s32.totalorder %s30, 1
      %s32 = scalar_select %p31, 0, %s30
      %s33 = sadd.s32 1, %s17
      %s34 = scalar_select %p31, %s33, %s17
      %p35 = scmp.ge.s32.totalorder %s34, 2
      %s36 = scalar_select %p35, 0, %s34
      %s37 = ssub.s32 %s17, %s36
      %s38 = ssub.s32 %s19, %s28
      %s39 = sor.u32 %s37, %s38
      %p40 = scmp.eq.s32.totalorder %s39, 0
      %s42 = sadd.s32 %s41, 1
      %s43 = scalar_select %p40, %s41, %s42
      %p46 = pneg %p40
      %p47 = scmp.eq.s32.totalorder %s10, 1
      %p48 = por %p46, %p47
      %p49 = scmp.ne.s32.totalorder %s41, %s44
      %p50 = scmp.eq.s32.totalorder %s10, 0
      %p51 = por %p49, %p50
      %p52 = scmp.ne.s32.totalorder %s41, %s44
      %p53 = scmp.eq.s32.totalorder %s15, 1
      %p54 = por %p52, %p53
      %p55 = scmp.ne.s32.totalorder %s44, %s45
      %p56 = scmp.eq.s32.totalorder %s15, 0
      %p57 = por %p55, %p56
      %p58 = scmp.ne.s32.totalorder %s44, %s45
      %p59 = scmp.eq.s32.totalorder %s16, 1
      %p60 = por %p58, %p59
      %p62 = scmp.ne.s32.totalorder %s45, %s61
      %p63 = scmp.eq.s32.totalorder %s16, 0
      %p64 = por %p62, %p63
      %s65 = sadd.s32 %s19, 1
      %s66 = sadd.s32 %s28, 1
      %s67 = ssub.s32 %s17, %s36
      %s68 = ssub.s32 %s65, %s66
      %s69 = sor.u32 %s67, %s68
      %p70 = scmp.eq.s32.totalorder %s69, 0
      %s72 = sadd.s32 %s71, 1
      %s73 = scalar_select %p70, %s71, %s72
      %p76 = pneg %p70
      %p77 = scmp.eq.s32.totalorder %s10, 1
      %p78 = por %p76, %p77
      %p79 = scmp.ne.s32.totalorder %s71, %s74
      %p80 = scmp.eq.s32.totalorder %s10, 0
      %p81 = por %p79, %p80
      %p82 = scmp.ne.s32.totalorder %s71, %s74
      %p83 = scmp.eq.s32.totalorder %s15, 1
      %p84 = por %p82, %p83
      %p85 = scmp.ne.s32.totalorder %s74, %s75
      %p86 = scmp.eq.s32.totalorder %s15, 0
      %p87 = por %p85, %p86
      %p88 = scmp.ne.s32.totalorder %s74, %s75
      %p89 = scmp.eq.s32.totalorder %s16, 1
      %p90 = por %p88, %p89
      %p92 = scmp.ne.s32.totalorder %s75, %s91
      %p93 = scmp.eq.s32.totalorder %s16, 0
      %p94 = por %p92, %p93
      %s95 = ssub.s32 %s18, %s32
      %p96 = scmp.eq.s32.totalorder %s95, 0
      %s98 = sadd.s32 %s97, 1
      %s99 = scalar_select %p96, %s97, %s98
      %p102 = pneg %p96
      %p103 = scmp.eq.s32.totalorder %s10, 1
      %p104 = por %p102, %p103
      %p105 = scmp.ne.s32.totalorder %s97, %s100
      %p106 = scmp.eq.s32.totalorder %s10, 0
      %p107 = por %p105, %p106
      %p108 = scmp.ne.s32.totalorder %s97, %s100
      %p109 = scmp.eq.s32.totalorder %s15, 1
      %p110 = por %p108, %p109
      %p111 = scmp.ne.s32.totalorder %s100, %s101
      %p112 = scmp.eq.s32.totalorder %s15, 0
      %p113 = por %p111, %p112
      %p114 = scmp.ne.s32.totalorder %s100, %s101
      %p115 = scmp.eq.s32.totalorder %s16, 1
      %p116 = por %p114, %p115
      %p118 = scmp.ne.s32.totalorder %s101, %s117
      %p119 = scmp.eq.s32.totalorder %s16, 0
      %p120 = por %p118, %p119
      %s121 = ssub.s32 %s18, %s32
      %p122 = scmp.eq.s32.totalorder %s121, 0
      %s124 = sadd.s32 %s123, 1
      %s125 = scalar_select %p122, %s123, %s124
      %p128 = pneg %p122
      %p129 = scmp.eq.s32.totalorder %s10, 1
      %p130 = por %p128, %p129
      %p131 = scmp.ne.s32.totalorder %s123, %s126
      %p132 = scmp.eq.s32.totalorder %s10, 0
      %p133 = por %p131, %p132
      %p134 = scmp.ne.s32.totalorder %s123, %s126
      %p135 = scmp.eq.s32.totalorder %s15, 1
      %p136 = por %p134, %p135
      %p137 = scmp.ne.s32.totalorder %s126, %s127
      %p138 = scmp.eq.s32.totalorder %s15, 0
      %p139 = por %p137, %p138
      %p140 = scmp.ne.s32.totalorder %s126, %s127
      %p141 = scmp.eq.s32.totalorder %s16, 1
      %p142 = por %p140, %p141
      %p144 = scmp.ne.s32.totalorder %s127, %s143
      %p145 = scmp.eq.s32.totalorder %s16, 0
      %p146 = por %p144, %p145
      %s147 = ssub.s32 %s17, %s36
      %s148 = ssub.s32 %s18, %s32
      %s149 = sor.u32 %s147, %s148
      %s150 = ssub.s32 %s19, %s28
      %s151 = sor.u32 %s149, %s150
      %p152 = scmp.eq.s32.totalorder %s151, 0
      %s154 = sadd.s32 %s153, 1
      %s155 = scalar_select %p152, %s153, %s154
      %p158 = pneg %p152
      %p159 = scmp.eq.s32.totalorder %s10, 1
      %p160 = por %p158, %p159
      %p161 = scmp.ne.s32.totalorder %s153, %s156
      %p162 = scmp.eq.s32.totalorder %s10, 0
      %p163 = por %p161, %p162
      %p164 = scmp.ne.s32.totalorder %s153, %s156
      %p165 = scmp.eq.s32.totalorder %s15, 1
      %p166 = por %p164, %p165
      %p167 = scmp.ne.s32.totalorder %s156, %s157
      %p168 = scmp.eq.s32.totalorder %s15, 0
      %p169 = por %p167, %p168
      %p170 = scmp.ne.s32.totalorder %s156, %s157
      %p171 = scmp.eq.s32.totalorder %s16, 1
      %p172 = por %p170, %p171
      %p174 = scmp.ne.s32.totalorder %s157, %s173
      %p175 = scmp.eq.s32.totalorder %s16, 0
      %p176 = por %p174, %p175
      %p177 = scmp.le.s32.totalorder 1, %s10
      %p178 = scmp.lt.s32.totalorder %s10, 3
      %p179 = pnand %p177, %p178
      %p180 = pneg %p179
      // Predicated region
      $region9: #{basic_conv2d.1} parent=5 // pred_check
        _
      $region10: #{basic_conv2d.1} parent=5 // pred_check_branch
        %182 = sbr.rel (%p179) target = $region12
      $region11: #{basic_conv2d.1} parent=5 // pred_region
        %s183 = ssub.s32 %s10, 1
        // Predicated region
        $region13: #{basic_conv2d.1} parent=11 // pred_check
          %p184 = pneg %p113
        $region14: #{basic_conv2d.1} parent=11 // pred_check_branch
          %186 = sbr.rel (%p184) target = $region16
        $region15: #{basic_conv2d.1} parent=11 // pred_region
          %s187 = smul.u32 4, %s21
          %p188 = scmp.lt.s32.totalorder %s187, 3
          %s189 = scalar_select %p188, %s187, 3
          %s190 = smul.addr %s189, 2
          %s191 = smul.addr %s190, 4
          %s192 = scalar_lea.vmem %s2, %s191
          %s193 = smul.u32 4, %s21
        $region16: #{basic_conv2d.1} parent=11 // pred_fallthru
          _
        // Predicated region
        $region17: #{basic_conv2d.1} parent=11 // pred_check
          %p194 = pneg %p139
        $region18: #{basic_conv2d.1} parent=11 // pred_check_branch
          %196 = sbr.rel (%p194) target = $region20
        $region19: #{basic_conv2d.1} parent=11 // pred_region
          %s197 = smul.u32 4, %s21
          %p198 = scmp.lt.s32.totalorder %s197, 3
          %s199 = scalar_select %p198, %s197, 3
          %s200 = smul.addr %s199, 8
          %s201 = scalar_lea.vmem %s3, %s200
          %s202 = smul.u32 4, %s21
        $region20: #{basic_conv2d.1} parent=11 // pred_fallthru
          _
      $region12: #{basic_conv2d.1} parent=5 // pred_fallthru
        _
      %p203 = scmp.lt.s32.totalorder %s10, 2
      // Predicated region
      $region21: #{basic_conv2d.1} parent=5 // pred_check
        %p204 = pneg %p203
      $region22: #{basic_conv2d.1} parent=5 // pred_check_branch
        %206 = sbr.rel (%p204) target = $region24
      $region23: #{basic_conv2d.1} parent=5 // pred_region
        // Predicated region
        $region25: #{basic_conv2d.1} parent=23 // pred_check
          %p207 = pneg %p51
        $region26: #{basic_conv2d.1} parent=23 // pred_check_branch
          %209 = sbr.rel (%p207) target = $region28
        $region27: #{basic_conv2d.1} parent=23 // pred_region
          %s210 = sand.u32 %s41, 1
          %s211 = sand.u32 %s41, 1
          %s212 = smul.addr %s211, 24
          %s213 = scalar_lea.vmem [#allocation2], %s212
          %s214 = smul.u32 3, %s19
          %s215 = smul.addr %s17, 12
          %s216 = sadd.s32 %s214, %s215
          %s217 = smul.addr %s216, 4
          %s218 = scalar_lea.vmem %s0, %s217
          // Predicated region
          $region29: #{basic_conv2d.1} parent=27 // pred_check
            _
          $region30: #{basic_conv2d.1} parent=27 // pred_check_branch
            %220 = sbr.rel (0) target = $region32
          $region31: #{basic_conv2d.1} parent=27 // pred_region
            // Predicated region
            $region33: #{basic_conv2d.1} parent=31 // pred_check
              _
            $region34: #{basic_conv2d.1} parent=31 // pred_check_branch
              %222 = sbr.rel (0) target = $region36
            $region35: #{basic_conv2d.1} parent=31 // pred_region
              %s223 = scalar_lea.vmem %s218, 8
              %s224 = scalar_lea.vmem %s213, 8 [#allocation2]
              loop: start=0, step=1, limit=1
              $region37: #{basic_conv2d.1} parent=35 // loop_pre_header
                _
              $region38: #{basic_conv2d.1} parent=35 // loop_header
                %s226 = sphi 0, %s230
                %p227 = scmp.ge.s32.totalorder %s226, 1
                %s231 = sphi %s218, %s218
                %s232 = sphi %s213, %s213
              $region39: #{basic_conv2d.1} parent=35 // loop_header_branch
                %229 = sbr.rel (%p227) target = $region43
              $region40: #{basic_conv2d.1} parent=35 // loop_body
                %v233 = vld [vmem:[%s231] sm:$0xff]
                %234 = vst [vmem:[%s232] sm:$0xff] %v233
                %v235 = vld [vmem:[%s231 + $0x18] sm:$0xff]
                %236 = vst [vmem:[%s232 + $0xc] sm:$0xff] %v235
              $region41: #{basic_conv2d.1} parent=35 // loop_footer
                %s230 = sadd.s32 1, %s226
              $region42: #{basic_conv2d.1} parent=35 // loop_footer_branch
                %225 = sbr.rel target = $region38
              $region43: #{basic_conv2d.1} parent=35 // loop_exit
                _
              %s238 = ssub.s32 16, 1
              loop: start=0, step=1, limit=1
              $region44: #{basic_conv2d.1} parent=35 // loop_pre_header
                _
              $region45: #{basic_conv2d.1} parent=35 // loop_header
                %s240 = sphi 0, %s244
                %p241 = scmp.ge.s32.totalorder %s240, 1
                %s245 = sphi %s223, %s223
                %s246 = sphi %s224, %s224
              $region46: #{basic_conv2d.1} parent=35 // loop_header_branch
                %243 = sbr.rel (%p241) target = $region50
              $region47: #{basic_conv2d.1} parent=35 // loop_body
                %v247 = vld [vmem:[%s245] sm:%s238]
                %248 = vst [vmem:[%s246] sm:%s238] %v247
                %v249 = vld [vmem:[%s245 + $0x18] sm:%s238]
                %250 = vst [vmem:[%s246 + $0xc] sm:%s238] %v249
              $region48: #{basic_conv2d.1} parent=35 // loop_footer
                %s244 = sadd.s32 1, %s240
              $region49: #{basic_conv2d.1} parent=35 // loop_footer_branch
                %239 = sbr.rel target = $region45
              $region50: #{basic_conv2d.1} parent=35 // loop_exit
                _
            $region36: #{basic_conv2d.1} parent=31 // pred_fallthru
              _
          $region32: #{basic_conv2d.1} parent=27 // pred_fallthru
            _
          %251 = vnop
        $region28: #{basic_conv2d.1} parent=23 // pred_fallthru
          _
        // Predicated region
        $region51: #{basic_conv2d.1} parent=23 // pred_check
          %p252 = pneg %p81
        $region52: #{basic_conv2d.1} parent=23 // pred_check_branch
          %254 = sbr.rel (%p252) target = $region54
        $region53: #{basic_conv2d.1} parent=23 // pred_region
          %s255 = sand.u32 %s71, 1
          %s256 = sand.u32 %s71, 1
          %s257 = smul.addr %s256, 24
          %s258 = scalar_lea.vmem [#allocation3], %s257
          %s259 = sadd.s32 %s19, 1
          %s260 = smul.u32 3, %s259
          %s261 = smul.addr %s17, 12
          %s262 = sadd.s32 %s260, %s261
          %s263 = smul.addr %s262, 4
          %s264 = scalar_lea.vmem %s1, %s263
          // Predicated region
          $region55: #{basic_conv2d.1} parent=53 // pred_check
            _
          $region56: #{basic_conv2d.1} parent=53 // pred_check_branch
            %266 = sbr.rel (0) target = $region58
          $region57: #{basic_conv2d.1} parent=53 // pred_region
            // Predicated region
            $region59: #{basic_conv2d.1} parent=57 // pred_check
              _
            $region60: #{basic_conv2d.1} parent=57 // pred_check_branch
              %268 = sbr.rel (0) target = $region62
            $region61: #{basic_conv2d.1} parent=57 // pred_region
              %s269 = scalar_lea.vmem %s264, 8
              %s270 = scalar_lea.vmem %s258, 8 [#allocation3]
              loop: start=0, step=1, limit=1
              $region63: #{basic_conv2d.1} parent=61 // loop_pre_header
                _
              $region64: #{basic_conv2d.1} parent=61 // loop_header
                %s272 = sphi 0, %s276
                %p273 = scmp.ge.s32.totalorder %s272, 1
                %s277 = sphi %s264, %s264
                %s278 = sphi %s258, %s258
              $region65: #{basic_conv2d.1} parent=61 // loop_header_branch
                %275 = sbr.rel (%p273) target = $region69
              $region66: #{basic_conv2d.1} parent=61 // loop_body
                %v279 = vld [vmem:[%s277] sm:$0xff]
                %280 = vst [vmem:[%s278] sm:$0xff] %v279
                %v281 = vld [vmem:[%s277 + $0x18] sm:$0xff]
                %282 = vst [vmem:[%s278 + $0xc] sm:$0xff] %v281
              $region67: #{basic_conv2d.1} parent=61 // loop_footer
                %s276 = sadd.s32 1, %s272
              $region68: #{basic_conv2d.1} parent=61 // loop_footer_branch
                %271 = sbr.rel target = $region64
              $region69: #{basic_conv2d.1} parent=61 // loop_exit
                _
              %s284 = ssub.s32 16, 1
              loop: start=0, step=1, limit=1
              $region70: #{basic_conv2d.1} parent=61 // loop_pre_header
                _
              $region71: #{basic_conv2d.1} parent=61 // loop_header
                %s286 = sphi 0, %s290
                %p287 = scmp.ge.s32.totalorder %s286, 1
                %s291 = sphi %s269, %s269
                %s292 = sphi %s270, %s270
              $region72: #{basic_conv2d.1} parent=61 // loop_header_branch
                %289 = sbr.rel (%p287) target = $region76
              $region73: #{basic_conv2d.1} parent=61 // loop_body
                %v293 = vld [vmem:[%s291] sm:%s284]
                %294 = vst [vmem:[%s292] sm:%s284] %v293
                %v295 = vld [vmem:[%s291 + $0x18] sm:%s284]
                %296 = vst [vmem:[%s292 + $0xc] sm:%s284] %v295
              $region74: #{basic_conv2d.1} parent=61 // loop_footer
                %s290 = sadd.s32 1, %s286
              $region75: #{basic_conv2d.1} parent=61 // loop_footer_branch
                %285 = sbr.rel target = $region71
              $region76: #{basic_conv2d.1} parent=61 // loop_exit
                _
            $region62: #{basic_conv2d.1} parent=57 // pred_fallthru
              _
          $region58: #{basic_conv2d.1} parent=53 // pred_fallthru
            _
          %297 = vnop
        $region54: #{basic_conv2d.1} parent=23 // pred_fallthru
          _
      $region24: #{basic_conv2d.1} parent=5 // pred_fallthru
        _
      %p298 = scmp.le.s32.totalorder 1, %s10
      %p299 = scmp.lt.s32.totalorder %s10, 3
      %p300 = pnand %p298, %p299
      %p301 = pneg %p300
      // Predicated region
      $region77: #{basic_conv2d.1} parent=5 // pred_check
        _
      $region78: #{basic_conv2d.1} parent=5 // pred_check_branch
        %303 = sbr.rel (%p300) target = $region80
      $region79: #{basic_conv2d.1} parent=5 // pred_region
        %s304 = ssub.s32 %s10, 1
        %s305 = sand.u32 %s44, 1
        %s306 = sand.u32 %s44, 1
        %s307 = smul.addr %s306, 24
        %s308 = scalar_lea.vmem [#allocation2], %s307
        // Predicated region
        $region81: #{basic_conv2d.1} parent=79 // pred_check
          %p309 = pneg %p57
        $region82: #{basic_conv2d.1} parent=79 // pred_check_branch
          %311 = sbr.rel (%p309) target = $region84
        $region83: #{basic_conv2d.1} parent=79 // pred_region
          _
        $region84: #{basic_conv2d.1} parent=79 // pred_fallthru
          _
        %s312 = sand.u32 %s74, 1
        %s313 = sand.u32 %s74, 1
        %s314 = smul.addr %s313, 24
        %s315 = scalar_lea.vmem [#allocation3], %s314
        // Predicated region
        $region85: #{basic_conv2d.1} parent=79 // pred_check
          %p316 = pneg %p87
        $region86: #{basic_conv2d.1} parent=79 // pred_check_branch
          %318 = sbr.rel (%p316) target = $region88
        $region87: #{basic_conv2d.1} parent=79 // pred_region
          _
        $region88: #{basic_conv2d.1} parent=79 // pred_fallthru
          _
        %s319 = sand.u32 %s44, 1
        %s320 = sand.u32 %s44, 1
        %s321 = smul.addr %s320, 24
        %s322 = scalar_lea.vmem [#allocation2], %s321
        %p323 = pneg %p57
        %p324 = pneg %p54
        %s325 = sand.u32 %s74, 1
        %s326 = sand.u32 %s74, 1
        %s327 = smul.addr %s326, 24
        %s328 = scalar_lea.vmem [#allocation3], %s327
        %p329 = pneg %p87
        %p330 = pneg %p84
        %s331 = smul.u32 4, %s21
        %p332 = scmp.lt.s32.totalorder %s331, 3
        %s333 = scalar_select %p332, %s331, 3
        %s334 = smul.addr %s333, 2
        %s335 = smul.addr %s334, 4
        %s336 = scalar_lea.vmem %s2, %s335
        %p337 = pneg %p113
        %p338 = pneg %p110
        %s339 = smul.u32 4, %s21
        %p340 = scmp.lt.s32.totalorder %s339, 3
        %s341 = scalar_select %p340, %s339, 3
        %s342 = smul.addr %s341, 8
        %s343 = scalar_lea.vmem %s3, %s342
        %p344 = pneg %p139
        %p345 = pneg %p136
        %p346 = pneg %p169
        %p347 = pneg %p166
        %s348 = smul.u32 4, %s21
        %s349 = smul.u32 3, %s22
        %p350 = scmp.lt.s32.totalorder %s20, 1
        %s351 = scalar_select %p350, %s20, 1
        %p352 = scmp.lt.s32.totalorder %s348, 3
        %s353 = scalar_select %p352, %s348, 3
        %p354 = scmp.lt.s32.totalorder %s349, 2
        %s355 = scalar_select %p354, %s349, 2
        %s356 = smul.addr %s353, 3
        %s357 = sadd.s32 %s355, %s356
        %s358 = smul.addr %s351, 12
        %s359 = sadd.s32 %s357, %s358
        %s360 = smul.addr %s359, 8
        %s361 = scalar_lea.vmem %s4, %s360
        %s362 = smul.u32 3, %s22
        %s363 = sadd.s32 %s22, 1
        %s364 = smul.u32 3, %s363
        %s365 = smul.u32 4, %s21
        %p366 = scmp.lt.s32.totalorder %s365, 3
        %s367 = scalar_select %p366, %s365, 3
        %s368 = smul.addr %s367, 2
        %s369 = smul.addr %s368, 4
        %s370 = scalar_lea.vmem %s2, %s369
        %s371 = smul.u32 4, %s21
        %s372 = smul.u32 4, %s21
        %p373 = scmp.lt.s32.totalorder %s372, 3
        %s374 = scalar_select %p373, %s372, 3
        %s375 = smul.addr %s374, 8
        %s376 = scalar_lea.vmem %s3, %s375
        %s377 = smul.u32 4, %s21
        %s378 = smul.u32 4, %s21
        %s379 = smul.u32 3, %s22
        %p380 = scmp.lt.s32.totalorder %s20, 1
        %s381 = scalar_select %p380, %s20, 1
        %p382 = scmp.lt.s32.totalorder %s378, 3
        %s383 = scalar_select %p382, %s378, 3
        %p384 = scmp.lt.s32.totalorder %s379, 2
        %s385 = scalar_select %p384, %s379, 2
        %s386 = smul.addr %s383, 3
        %s387 = sadd.s32 %s385, %s386
        %s388 = smul.addr %s381, 12
        %s389 = sadd.s32 %s387, %s388
        %s390 = smul.addr %s389, 8
        %s391 = scalar_lea.vmem %s4, %s390
        %s392 = smul.u32 4, %s21
        %s393 = smul.u32 3, %s22
        %v395 = vld [vmem:[%s308] sm:$0xff]
        %v396 = vld [vmem:[%s308 + $0x8] sm:$0xf]
        %v397 = vld [vmem:[%s308 + $0xc] sm:$0xff]
        %v398 = vld [vmem:[%s308 + $0x14] sm:$0xf]
        %v399 = vld [vmem:[%s315] sm:$0xff]
        %v400 = vld [vmem:[%s315 + $0xc] sm:$0xff]
        %v405 = vunpack.c.l.b16 %v395
        %v406 = vunpack.c.h.b16 %v395
        %v407 = vunpack.c.l.b16 %v396
        %v408 = vunpack.c.l.b16 %v397
        %v409 = vunpack.c.h.b16 %v397
        %v410 = vunpack.c.l.b16 %v398
        %v411 = vpack.c.b16 %v408, %v405
        %v412 = vpack.c.b16 %v409, %v406
        %v413 = vpack.c.b16 %v410, %v407
        %v419 = vunpack.c.l.b16 %v399
        %v420 = vunpack.c.l.b16 %v400
        %v421 = vpack.c.b16 %v420, %v419
        %422 = vrot.lane.b32.xlu0 %v411, 127
        %v423 = vpop.permute.xlu0 %422
        %424 = vrot.lane.b32.xlu0 %v412, 127
        %v425 = vpop.permute.xlu0 %424
        %426 = vrot.lane.b32.xlu0 %v413, 127
        %v427 = vpop.permute.xlu0 %426
        %428 = vrot.lane.b32.xlu0 %v421, 127
        %v429 = vpop.permute.xlu0 %428
        %vm430 = vcmask 1039360
        %v431 = vsel %vm430, %v423, %v425
        %v432 = vsel %vm430, %v425, %v427
        %v433 = vsel %vm430, %v427, %v429
        %437 = vrot.lane.b32.xlu0 %v411, 126
        %v438 = vpop.permute.xlu0 %437
        %439 = vrot.lane.b32.xlu0 %v412, 126
        %v440 = vpop.permute.xlu0 %439
        %441 = vrot.lane.b32.xlu0 %v413, 126
        %v442 = vpop.permute.xlu0 %441
        %443 = vrot.lane.b32.xlu0 %v421, 126
        %v444 = vpop.permute.xlu0 %443
        %vm445 = vcmask 1031168
        %v446 = vsel %vm445, %v438, %v440
        %v447 = vsel %vm445, %v440, %v442
        %v448 = vsel %vm445, %v442, %v444
        %452 = vrot.lane.b32.xlu0 %v411, 110
        %v453 = vpop.permute.xlu0 %452
        %454 = vrot.lane.b32.xlu0 %v412, 110
        %v455 = vpop.permute.xlu0 %454
        %456 = vrot.lane.b32.xlu0 %v413, 110
        %v457 = vpop.permute.xlu0 %456
        %458 = vrot.lane.b32.xlu0 %v421, 110
        %v459 = vpop.permute.xlu0 %458
        %vm460 = vcmask 900096
        %v461 = vsel %vm460, %v453, %v455
        %v462 = vsel %vm460, %v455, %v457
        %v463 = vsel %vm460, %v457, %v459
        %467 = vrot.lane.b32.xlu0 %v411, 109
        %v468 = vpop.permute.xlu0 %467
        %469 = vrot.lane.b32.xlu0 %v412, 109
        %v470 = vpop.permute.xlu0 %469
        %471 = vrot.lane.b32.xlu0 %v413, 109
        %v472 = vpop.permute.xlu0 %471
        %473 = vrot.lane.b32.xlu0 %v421, 109
        %v474 = vpop.permute.xlu0 %473
        %vm475 = vcmask 891904
        %v476 = vsel %vm475, %v468, %v470
        %v477 = vsel %vm475, %v470, %v472
        %v478 = vsel %vm475, %v472, %v474
        %482 = vrot.lane.b32.xlu0 %v411, 108
        %v483 = vpop.permute.xlu0 %482
        %484 = vrot.lane.b32.xlu0 %v412, 108
        %v485 = vpop.permute.xlu0 %484
        %486 = vrot.lane.b32.xlu0 %v413, 108
        %v487 = vpop.permute.xlu0 %486
        %488 = vrot.lane.b32.xlu0 %v421, 108
        %v489 = vpop.permute.xlu0 %488
        %vm490 = vcmask 883712
        %v491 = vsel %vm490, %v483, %v485
        %v492 = vsel %vm490, %v485, %v487
        %v493 = vsel %vm490, %v487, %v489
        %497 = vrot.lane.b32.xlu0 %v411, 92
        %v498 = vpop.permute.xlu0 %497
        %499 = vrot.lane.b32.xlu0 %v412, 92
        %v500 = vpop.permute.xlu0 %499
        %501 = vrot.lane.b32.xlu0 %v413, 92
        %v502 = vpop.permute.xlu0 %501
        %503 = vrot.lane.b32.xlu0 %v421, 92
        %v504 = vpop.permute.xlu0 %503
        %vm505 = vcmask 752640
        %v506 = vsel %vm505, %v498, %v500
        %v507 = vsel %vm505, %v500, %v502
        %v508 = vsel %vm505, %v502, %v504
        %512 = vrot.lane.b32.xlu0 %v411, 91
        %v513 = vpop.permute.xlu0 %512
        %514 = vrot.lane.b32.xlu0 %v412, 91
        %v515 = vpop.permute.xlu0 %514
        %516 = vrot.lane.b32.xlu0 %v413, 91
        %v517 = vpop.permute.xlu0 %516
        %518 = vrot.lane.b32.xlu0 %v421, 91
        %v519 = vpop.permute.xlu0 %518
        %vm520 = vcmask 744448
        %v521 = vsel %vm520, %v513, %v515
        %v522 = vsel %vm520, %v515, %v517
        %v523 = vsel %vm520, %v517, %v519
        %527 = vrot.lane.b32.xlu0 %v411, 90
        %v528 = vpop.permute.xlu0 %527
        %529 = vrot.lane.b32.xlu0 %v412, 90
        %v530 = vpop.permute.xlu0 %529
        %531 = vrot.lane.b32.xlu0 %v413, 90
        %v532 = vpop.permute.xlu0 %531
        %533 = vrot.lane.b32.xlu0 %v421, 90
        %v534 = vpop.permute.xlu0 %533
        %vm535 = vcmask 736256
        %v536 = vsel %vm535, %v528, %v530
        %v537 = vsel %vm535, %v530, %v532
        %v538 = vsel %vm535, %v532, %v534
        %v542 = vld [vmem:[%s370] sm:$0xff]
        %v543 = vld [vmem:[%s370 + $0x8] sm:$0xff]
        %v544 = vld [vmem:[%s370 + $0x10] sm:$0xff]
        %v545 = vld [vmem:[%s370 + $0x18] sm:$0xff]
        %v550 = vunpack.c.l.b16 %v542
        %v551 = vunpack.c.h.b16 %v542
        %v552 = vunpack.c.l.b16 %v543
        %v553 = vunpack.c.h.b16 %v543
        %v554 = vunpack.c.l.b16 %v544
        %v555 = vunpack.c.h.b16 %v544
        %v556 = vunpack.c.l.b16 %v545
        %v557 = vunpack.c.h.b16 %v545
        %v558 = vpack.c.b16 %v552, %v550
        %v559 = vpack.c.b16 %v553, %v551
        %v560 = vpack.c.b16 %v556, %v554
        %v561 = vpack.c.b16 %v557, %v555
        %vm564 = vcmask 130048
        %v566 = vsel %vm564, %v559, 0
        %v569 = vsel %vm564, %v561, 0
        %571 = vmatprep.subr.bf16.mxu0 %v522
        %572 = vmatpush1.bf16.msra.mxu0 %v521
        %573 = vmatprep.subr.bf16.mxu0 %v507
        %574 = vmatpush1.bf16.msra.mxu0 %v506
        %575 = vmatprep.subr.bf16.mxu0 %v492
        %576 = vmatpush1.bf16.msra.mxu0 %v491
        %577 = vmatprep.subr.bf16.mxu0 %v477
        %578 = vmatpush1.bf16.msra.mxu0 %v476
        %579 = vmatprep.subr.bf16.mxu0 %v462
        %580 = vmatpush1.bf16.msra.mxu0 %v461
        %581 = vmatprep.subr.bf16.mxu0 %v447
        %582 = vmatpush1.bf16.msra.mxu0 %v446
        %583 = vmatprep.subr.bf16.mxu0 %v432
        %584 = vmatpush1.bf16.msra.mxu0 %v431
        %585 = vmatprep.subr.bf16.mxu0 %v412
        %586 = vmatpush1.bf16.msra.mxu0 %v411
        %587 = vmatprep.subr.bf16.mxu0 0
        %588 = vmatpush2.bf16.msra.mxu0 0
        %589 = vmatprep.subr.bf16.mxu0 0
        %590 = vmatpush2.bf16.msra.mxu0 0
        %591 = vmatprep.subr.bf16.mxu0 0
        %592 = vmatpush2.bf16.msra.mxu0 0
        %593 = vmatprep.subr.bf16.mxu0 0
        %594 = vmatpush2.bf16.msra.mxu0 0
        %595 = vmatprep.subr.bf16.mxu0 0
        %596 = vmatpush2.bf16.msra.mxu0 0
        %597 = vmatprep.subr.bf16.mxu0 0
        %598 = vmatpush2.bf16.msra.mxu0 0
        %599 = vmatprep.subr.bf16.mxu0 0
        %600 = vmatpush2.bf16.msra.mxu0 0
        %601 = vmatprep.subr.bf16.mxu0 %v537
        %602 = vmatpush2.bf16.msra.mxu0 %v536
        %603 = vmatprep.mubr.bf16.mxu0 %v566
        %604 = vmatmul.mubr.bf16.gmra.mxu0 %v558
        %v605 = vpop.f32.mrf.mxu0
        %v606 = vadd.f32 0.0, %v605
        %v607 = vpop.f32.mrf.mxu0
        %v608 = vadd.f32 0.0, %v607
        %v609 = vpop.f32.mrf.mxu0
        %v610 = vadd.f32 0.0, %v609
        %v611 = vpop.f32.mrf.mxu0
        %v612 = vadd.f32 0.0, %v611
        %613 = vmatprep.mubr.bf16.mxu0 %v569
        %614 = vmatmul.mubr.bf16.gmra.mxu0 %v560
        %v615 = vpop.f32.mrf.mxu0
        %v616 = vadd.f32 0.0, %v615
        %v617 = vpop.f32.mrf.mxu0
        %v618 = vadd.f32 0.0, %v617
        %v619 = vpop.f32.mrf.mxu0
        %v620 = vadd.f32 0.0, %v619
        %v621 = vpop.f32.mrf.mxu0
        %v622 = vadd.f32 0.0, %v621
        %623 = vdwg.mxu0
        %624 = vmatprep.subr.bf16.mxu0 0
        %625 = vmatpush1.bf16.msra.mxu0 %v523
        %626 = vmatprep.subr.bf16.mxu0 0
        %627 = vmatpush1.bf16.msra.mxu0 %v508
        %628 = vmatprep.subr.bf16.mxu0 0
        %629 = vmatpush1.bf16.msra.mxu0 %v493
        %630 = vmatprep.subr.bf16.mxu0 0
        %631 = vmatpush1.bf16.msra.mxu0 %v478
        %632 = vmatprep.subr.bf16.mxu0 0
        %633 = vmatpush1.bf16.msra.mxu0 %v463
        %634 = vmatprep.subr.bf16.mxu0 0
        %635 = vmatpush1.bf16.msra.mxu0 %v448
        %636 = vmatprep.subr.bf16.mxu0 0
        %637 = vmatpush1.bf16.msra.mxu0 %v433
        %638 = vmatprep.subr.bf16.mxu0 0
        %639 = vmatpush1.bf16.msra.mxu0 %v413
        %640 = vmatprep.subr.bf16.mxu0 0
        %641 = vmatpush2.bf16.msra.mxu0 0
        %642 = vmatprep.subr.bf16.mxu0 0
        %643 = vmatpush2.bf16.msra.mxu0 0
        %644 = vmatprep.subr.bf16.mxu0 0
        %645 = vmatpush2.bf16.msra.mxu0 0
        %646 = vmatprep.subr.bf16.mxu0 0
        %647 = vmatpush2.bf16.msra.mxu0 0
        %648 = vmatprep.subr.bf16.mxu0 0
        %649 = vmatpush2.bf16.msra.mxu0 0
        %650 = vmatprep.subr.bf16.mxu0 0
        %651 = vmatpush2.bf16.msra.mxu0 0
        %652 = vmatprep.subr.bf16.mxu0 0
        %653 = vmatpush2.bf16.msra.mxu0 0
        %654 = vmatprep.subr.bf16.mxu0 0
        %655 = vmatpush2.bf16.msra.mxu0 %v538
        %656 = vmatprep.mubr.bf16.mxu0 %v566
        %657 = vmatmul.mubr.bf16.gmra.mxu0 %v558
        %v658 = vpop.f32.mrf.mxu0
        %v659 = vadd.f32 0.0, %v658
        %v660 = vpop.f32.mrf.mxu0
        %v661 = vpop.f32.mrf.mxu0
        %v662 = vadd.f32 0.0, %v661
        %v663 = vpop.f32.mrf.mxu0
        %664 = vmatprep.mubr.bf16.mxu0 %v569
        %665 = vmatmul.mubr.bf16.gmra.mxu0 %v560
        %v666 = vpop.f32.mrf.mxu0
        %v667 = vadd.f32 0.0, %v666
        %v668 = vpop.f32.mrf.mxu0
        %v669 = vpop.f32.mrf.mxu0
        %v670 = vadd.f32 0.0, %v669
        %v671 = vpop.f32.mrf.mxu0
        %672 = vdwg.mxu0
        %v673 = vld [vmem:[%s376] sm:$0xff]
        %v674 = vld [vmem:[%s376 + $0x8] sm:$0xff]
        %v675 = vld [vmem:[%s376 + $0x10] sm:$0xff]
        %v676 = vld [vmem:[%s376 + $0x18] sm:$0xff]
        %678 = vset.pattern.permute.xlu0 0
        %679 = vperm.xlu0 %678, %v673
        %v680 = vpop.permute.xlu0 %679
        %683 = vset.pattern.permute.xlu0 0
        %684 = vperm.xlu0 %683, %v674
        %v685 = vpop.permute.xlu0 %684
        %688 = vset.pattern.permute.xlu0 0
        %689 = vperm.xlu0 %688, %v675
        %v690 = vpop.permute.xlu0 %689
        %693 = vset.pattern.permute.xlu0 0
        %694 = vperm.xlu0 %693, %v676
        %v695 = vpop.permute.xlu0 %694
        %v697 = vmul.f32 %v606, %v680
        %v698 = vmul.f32 %v608, %v680
        %v699 = vmul.f32 %v659, %v680
        %v700 = vmul.f32 %v610, %v685
        %v701 = vmul.f32 %v612, %v685
        %v702 = vmul.f32 %v662, %v685
        %v703 = vmul.f32 %v616, %v690
        %v704 = vmul.f32 %v618, %v690
        %v705 = vmul.f32 %v667, %v690
        %v706 = vmul.f32 %v620, %v695
        %v707 = vmul.f32 %v622, %v695
        %v708 = vmul.f32 %v670, %v695
        %709 = vset.pattern.permute.xlu0 1
        %710 = vperm.xlu0 %709, %v673
        %v711 = vpop.permute.xlu0 %710
        %713 = vset.pattern.permute.xlu0 1
        %714 = vperm.xlu0 %713, %v674
        %v715 = vpop.permute.xlu0 %714
        %717 = vset.pattern.permute.xlu0 1
        %718 = vperm.xlu0 %717, %v675
        %v719 = vpop.permute.xlu0 %718
        %721 = vset.pattern.permute.xlu0 1
        %722 = vperm.xlu0 %721, %v676
        %v723 = vpop.permute.xlu0 %722
        %v725 = vadd.f32 %v697, %v711
        %v726 = vadd.f32 %v698, %v711
        %v727 = vadd.f32 %v699, %v711
        %v728 = vadd.f32 %v700, %v715
        %v729 = vadd.f32 %v701, %v715
        %v730 = vadd.f32 %v702, %v715
        %v731 = vadd.f32 %v703, %v719
        %v732 = vadd.f32 %v704, %v719
        %v733 = vadd.f32 %v705, %v719
        %v734 = vadd.f32 %v706, %v723
        %v735 = vadd.f32 %v707, %v723
        %v736 = vadd.f32 %v708, %v723
        %737 = vst [vmem:[%s391] sm:$0xff] %v725
        %738 = vst [vmem:[%s391 + $0x8] sm:$0xff] %v726
        %739 = vst [vmem:[%s391 + $0x10] sm:$0xff] %v727
        %740 = vst [vmem:[%s391 + $0x18] sm:$0xff] %v728
        %741 = vst [vmem:[%s391 + $0x20] sm:$0xff] %v729
        %742 = vst [vmem:[%s391 + $0x28] sm:$0xff] %v730
        %743 = vst [vmem:[%s391 + $0x30] sm:$0xff] %v731
        %744 = vst [vmem:[%s391 + $0x38] sm:$0xff] %v732
        %745 = vst [vmem:[%s391 + $0x40] sm:$0xff] %v733
        %746 = vst [vmem:[%s391 + $0x48] sm:$0xff] %v734
        %747 = vst [vmem:[%s391 + $0x50] sm:$0xff] %v735
        %748 = vst [vmem:[%s391 + $0x58] sm:$0xff] %v736
        %s749 = smul.u32 4, %s21
        %s750 = smul.u32 3, %s22
        %p751 = scmp.lt.s32.totalorder %s20, 1
        %s752 = scalar_select %p751, %s20, 1
        %p753 = scmp.lt.s32.totalorder %s749, 3
        %s754 = scalar_select %p753, %s749, 3
        %p755 = scmp.lt.s32.totalorder %s750, 2
        %s756 = scalar_select %p755, %s750, 2
        %s757 = smul.addr %s754, 3
        %s758 = sadd.s32 %s756, %s757
        %s759 = smul.addr %s752, 12
        %s760 = sadd.s32 %s758, %s759
        %s761 = smul.addr %s760, 8
        %s762 = scalar_lea.vmem %s4, %s761
        // Predicated region
        $region89: #{basic_conv2d.1} parent=79 // pred_check
          %p763 = pneg %p166
        $region90: #{basic_conv2d.1} parent=79 // pred_check_branch
          %765 = sbr.rel (%p763) target = $region92
        $region91: #{basic_conv2d.1} parent=79 // pred_region
          %s766 = smul.u32 4, %s21
          %s767 = smul.u32 3, %s22
        $region92: #{basic_conv2d.1} parent=79 // pred_fallthru
          _
      $region80: #{basic_conv2d.1} parent=5 // pred_fallthru
        _
      %p768 = scmp.le.s32.totalorder 2, %s10
      // Predicated region
      $region93: #{basic_conv2d.1} parent=5 // pred_check
        %p769 = pneg %p768
      $region94: #{basic_conv2d.1} parent=5 // pred_check_branch
        %771 = sbr.rel (%p769) target = $region96
      $region95: #{basic_conv2d.1} parent=5 // pred_region
        %s772 = ssub.s32 %s10, 2
        // Predicated region
        $region97: #{basic_conv2d.1} parent=95 // pred_check
          %p773 = pneg %p172
        $region98: #{basic_conv2d.1} parent=95 // pred_check_branch
          %775 = sbr.rel (%p773) target = $region100
        $region99: #{basic_conv2d.1} parent=95 // pred_region
          %s776 = smul.u32 4, %s24
          %s777 = smul.u32 3, %s25
          %p778 = scmp.lt.s32.totalorder %s23, 1
          %s779 = scalar_select %p778, %s23, 1
          %p780 = scmp.lt.s32.totalorder %s776, 3
          %s781 = scalar_select %p780, %s776, 3
          %p782 = scmp.lt.s32.totalorder %s777, 2
          %s783 = scalar_select %p782, %s777, 2
          %s784 = smul.addr %s781, 3
          %s785 = sadd.s32 %s783, %s784
          %s786 = smul.addr %s779, 12
          %s787 = sadd.s32 %s785, %s786
          %s788 = smul.addr %s787, 8
          %s789 = scalar_lea.vmem %s4, %s788
        $region100: #{basic_conv2d.1} parent=95 // pred_fallthru
          _
      $region96: #{basic_conv2d.1} parent=5 // pred_fallthru
        _
    $region6: #{basic_conv2d.1} parent=1 // loop_footer
      %s14 = sadd.s32 1, %s10
    $region7: #{basic_conv2d.1} parent=1 // loop_footer_branch
      %9 = sbr.rel target = $region3
    $region8: #{basic_conv2d.1} parent=1 // loop_exit
      _

</llo_original>
